<compile_context>
chip_gen: v5e
topology: v5e:2x2
jax: 0.10.0
libtpu: 0.0.40
codegen_flags: <defaults>
</compile_context>

<pallas_src>
import jax
import jax.numpy as jnp
from jax.experimental import pallas as pl
from jax.experimental.pallas import tpu as pltpu

IN_DIM = 28 * 28   # 784
HID = 64
OUT_DIM = 10
OUT_PAD = 128      # lane-dense padded output width


def _round_up(x, m):
    return ((x + m - 1) // m) * m


def _choose_bm(batch, bm_max):
    # Sublane-aligned batch tile; aim for >= 2 grid steps whenever the batch
    # allows it so ("parallel",) can shard the grid across v7x's two TCs.
    half = _round_up(pl.cdiv(batch, 2), 8)
    return max(8, min(bm_max, half))


def residual_mlp_kernel(x_ref, w1_ref, b1_ref, w2_ref, b2_ref, w3_ref, b3_ref,
                        o_ref):
    x = x_ref[...]                                            # (bm, 784) f32

    # layer 1: 784 -> 64, relu (f32 MXU matmul, f32 accumulation)
    h1 = jnp.dot(x, w1_ref[...], preferred_element_type=jnp.float32)
    h1 = jnp.maximum(h1 + b1_ref[...], 0.0)                   # (bm, 64) f32

    # layer 2: 64 -> 64, relu
    h2 = jnp.dot(h1, w2_ref[...], preferred_element_type=jnp.float32)
    h2 = jnp.maximum(h2 + b2_ref[...], 0.0)                   # (bm, 64) f32

    # residual add; dropout(p=0.1) is identity in eval mode
    # TODO(synk): training-mode dropout would need pltpu.prng_seed +
    # pltpu.stateful_bernoulli; forward semantics here follow eval (identity).
    res = h1 + h2                                             # (bm, 64) f32

    # output layer: 64 -> 10 (padded to 128 lanes with zero weight columns)
    logits = jnp.dot(res, w3_ref[...], preferred_element_type=jnp.float32)
    # lane-dense bf16 store (unmasked vst on the 128-wide output slab)
    o_ref[...] = (logits + b3_ref[...]).astype(o_ref.dtype)   # (bm, 128) bf16


def pack_params(params):
    """One-time per-model packing (hoisted out of the per-call path):
    pad the output projection 10 -> 128 lanes with zeros so the kernel's final
    store is lane-dense. Weights stay f32 (kernel is memory-bound; keeps
    numerical parity with the torch f32 reference)."""
    w1, b1, w2, b2, w3, b3 = params
    w3p = jnp.pad(w3, ((0, 0), (0, OUT_PAD - OUT_DIM)))
    b3p = jnp.pad(b3, ((0, 0), (0, OUT_PAD - OUT_DIM)))
    return (w1, b1, w2, b2, w3p, b3p)


def residual_network_forward(x, packed_params, *, bm=2048):
    """x: (B, 784) float32. packed_params: output of pack_params().
    Returns logits (B, 10) float32."""
    w1, b1, w2, b2, w3p, b3p = packed_params
    B = x.shape[0]

    bm_eff = _choose_bm(B, bm)
    grid = (pl.cdiv(B, bm_eff),)   # partial last tile handled by Pallas masking

    out_padded = pl.pallas_call(
        residual_mlp_kernel,
        out_shape=jax.ShapeDtypeStruct((B, OUT_PAD), jnp.bfloat16),
        grid_spec=pltpu.PrefetchScalarGridSpec(
            num_scalar_prefetch=0,
            grid=grid,
            in_specs=[
                pl.BlockSpec((bm_eff, IN_DIM), lambda i: (i, 0)),   # x tile
                pl.BlockSpec((IN_DIM, HID), lambda i: (0, 0)),      # W1^T
                pl.BlockSpec((1, HID), lambda i: (0, 0)),           # b1
                pl.BlockSpec((HID, HID), lambda i: (0, 0)),         # W2^T
                pl.BlockSpec((1, HID), lambda i: (0, 0)),           # b2
                pl.BlockSpec((HID, OUT_PAD), lambda i: (0, 0)),     # W3^T (pad)
                pl.BlockSpec((1, OUT_PAD), lambda i: (0, 0)),       # b3 (pad)
            ],
            out_specs=pl.BlockSpec((bm_eff, OUT_PAD), lambda i: (i, 0)),
        ),
        compiler_params=pltpu.CompilerParams(
            dimension_semantics=("parallel",),
            vmem_limit_bytes=32 * 1024 * 1024),
    )(x, w1, b1, w2, b2, w3p, b3p)

    # TODO(synk): if the downstream consumer can take the padded bf16 slab,
    # return `out_padded` directly to skip this small extra slice/cast pass.
    return out_padded[:, :OUT_DIM].astype(jnp.float32)


def init_params(key):
    """Deterministic synthetic parameters matching nn.Linear shapes
    (stored pre-transposed as (in, out))."""
    k1, k2, k3, k4, k5, k6 = jax.random.split(key, 6)
    scale = 0.02
    w1 = scale * jax.random.normal(k1, (IN_DIM, HID), jnp.float32)
    b1 = scale * jax.random.normal(k2, (1, HID), jnp.float32)
    w2 = scale * jax.random.normal(k3, (HID, HID), jnp.float32)
    b2 = scale * jax.random.normal(k4, (1, HID), jnp.float32)
    w3 = scale * jax.random.normal(k5, (HID, OUT_DIM), jnp.float32)
    b3 = scale * jax.random.normal(k6, (1, OUT_DIM), jnp.float32)
    return (w1, b1, w2, b2, w3, b3)


def reference_forward(x, params):
    """Pure-JAX f32 reference (eval-mode dropout = identity)."""
    w1, b1, w2, b2, w3, b3 = params
    h1 = jnp.maximum(x @ w1 + b1, 0.0)
    h2 = jnp.maximum(h1 @ w2 + b2, 0.0)
    return (h1 + h2) @ w3 + b3


if __name__ == "__main__":
    key = jax.random.PRNGKey(0)
    kx, kp = jax.random.split(key)

    params = init_params(kp)
    packed = pack_params(params)          # one-time weight prep

    fwd = jax.jit(residual_network_forward)

    # B=6: 1-step grid with a masked partial tile (B not a multiple of 8).
    x6 = jax.random.normal(kx, (6, IN_DIM), jnp.float32)
    y6 = jax.block_until_ready(fwd(x6, packed))
    r6 = reference_forward(x6, params)
    assert y6.shape == (6, OUT_DIM)
    assert jnp.allclose(y6, r6, atol=5e-3, rtol=5e-3), "mismatch (B=6)"

    # B=20: multi-step grid (bm=16 -> 2 steps) with a masked partial last tile.
    x20 = jax.random.normal(jax.random.fold_in(kx, 1), (20, IN_DIM), jnp.float32)
    y20 = jax.block_until_ready(fwd(x20, packed))
    r20 = reference_forward(x20, params)
    assert y20.shape == (20, OUT_DIM)
    assert jnp.allclose(y20, r20, atol=5e-3, rtol=5e-3), "mismatch (B=20)"

    print("KERNEL_OK")
</pallas_src>

<mosaic_0001>
module attributes {stable_mosaic.version = 11 : i64} {
  func.func @residual_mlp_kernel(%arg0: i32, %arg1: memref<8x784xf32, #tpu.memory_space<vmem>>, %arg2: memref<784x64xf32, #tpu.memory_space<vmem>>, %arg3: memref<1x64xf32, #tpu.memory_space<vmem>>, %arg4: memref<64x64xf32, #tpu.memory_space<vmem>>, %arg5: memref<1x64xf32, #tpu.memory_space<vmem>>, %arg6: memref<64x128xf32, #tpu.memory_space<vmem>>, %arg7: memref<1x128xf32, #tpu.memory_space<vmem>>, %arg8: memref<8x128xbf16, #tpu.memory_space<vmem>>) attributes {dimension_semantics = [#tpu.dimension_semantics<parallel>], iteration_bounds = array<i64: 1>, scalar_prefetch = 0 : i64, scratch_operands = 0 : i64, tpu.core_type = #tpu.core_type<tc>, window_params = [{transform_indices = @transform_0, window_bounds = array<i64: 8, 784>}, {pipeline_mode = #tpu.pipeline_mode<synchronous>, transform_indices = @transform_1, window_bounds = array<i64: 784, 64>}, {pipeline_mode = #tpu.pipeline_mode<synchronous>, transform_indices = @transform_2, window_bounds = array<i64: 1, 64>}, {pipeline_mode = #tpu.pipeline_mode<synchronous>, transform_indices = @transform_3, window_bounds = array<i64: 64, 64>}, {pipeline_mode = #tpu.pipeline_mode<synchronous>, transform_indices = @transform_4, window_bounds = array<i64: 1, 64>}, {pipeline_mode = #tpu.pipeline_mode<synchronous>, transform_indices = @transform_5, window_bounds = array<i64: 64, 128>}, {pipeline_mode = #tpu.pipeline_mode<synchronous>, transform_indices = @transform_6, window_bounds = array<i64: 1, 128>}, {transform_indices = @transform_7, window_bounds = array<i64: 8, 128>}]} {
    %c0 = arith.constant 0 : index
    %c0_0 = arith.constant 0 : index
    %0 = vector.load %arg1[%c0, %c0_0] : memref<8x784xf32, #tpu.memory_space<vmem>>, vector<8x784xf32>
    %c0_1 = arith.constant 0 : index
    %c0_2 = arith.constant 0 : index
    %1 = vector.load %arg2[%c0_1, %c0_2] : memref<784x64xf32, #tpu.memory_space<vmem>>, vector<784x64xf32>
    %cst = arith.constant dense<0.000000e+00> : vector<8x64xf32>
    %2 = tpu.matmul %0, %1, %cst {dimension_numbers = #tpu.dot_dimension_numbers<[1], [0], [0], [1], [0, 0, 1, 1], [], []>} : vector<8x784xf32>, vector<784x64xf32>, vector<8x64xf32> -> vector<8x64xf32>
    %c0_3 = arith.constant 0 : index
    %c0_4 = arith.constant 0 : index
    %3 = vector.load %arg3[%c0_3, %c0_4] : memref<1x64xf32, #tpu.memory_space<vmem>>, vector<1x64xf32>
    %4 = vector.broadcast %3 : vector<1x64xf32> to vector<8x64xf32>
    %5 = arith.addf %2, %4 : vector<8x64xf32>
    %cst_5 = arith.constant 0.000000e+00 : f32
    %6 = vector.broadcast %cst_5 : f32 to vector<8x64xf32>
    %7 = arith.maximumf %5, %6 : vector<8x64xf32>
    %c0_6 = arith.constant 0 : index
    %c0_7 = arith.constant 0 : index
    %8 = vector.load %arg4[%c0_6, %c0_7] : memref<64x64xf32, #tpu.memory_space<vmem>>, vector<64x64xf32>
    %cst_8 = arith.constant dense<0.000000e+00> : vector<8x64xf32>
    %9 = tpu.matmul %7, %8, %cst_8 {dimension_numbers = #tpu.dot_dimension_numbers<[1], [0], [0], [1], [0, 0, 1, 1], [], []>} : vector<8x64xf32>, vector<64x64xf32>, vector<8x64xf32> -> vector<8x64xf32>
    %c0_9 = arith.constant 0 : index
    %c0_10 = arith.constant 0 : index
    %10 = vector.load %arg5[%c0_9, %c0_10] : memref<1x64xf32, #tpu.memory_space<vmem>>, vector<1x64xf32>
    %11 = vector.broadcast %10 : vector<1x64xf32> to vector<8x64xf32>
    %12 = arith.addf %9, %11 : vector<8x64xf32>
    %cst_11 = arith.constant 0.000000e+00 : f32
    %13 = vector.broadcast %cst_11 : f32 to vector<8x64xf32>
    %14 = arith.maximumf %12, %13 : vector<8x64xf32>
    %15 = arith.addf %7, %14 : vector<8x64xf32>
    %c0_12 = arith.constant 0 : index
    %c0_13 = arith.constant 0 : index
    %16 = vector.load %arg6[%c0_12, %c0_13] : memref<64x128xf32, #tpu.memory_space<vmem>>, vector<64x128xf32>
    %cst_14 = arith.constant dense<0.000000e+00> : vector<8x128xf32>
    %17 = tpu.matmul %15, %16, %cst_14 {dimension_numbers = #tpu.dot_dimension_numbers<[1], [0], [0], [1], [0, 0, 1, 1], [], []>} : vector<8x64xf32>, vector<64x128xf32>, vector<8x128xf32> -> vector<8x128xf32>
    %c0_15 = arith.constant 0 : index
    %c0_16 = arith.constant 0 : index
    %18 = vector.load %arg7[%c0_15, %c0_16] : memref<1x128xf32, #tpu.memory_space<vmem>>, vector<1x128xf32>
    %19 = vector.broadcast %18 : vector<1x128xf32> to vector<8x128xf32>
    %20 = arith.addf %17, %19 : vector<8x128xf32>
    %21 = arith.truncf %20 : vector<8x128xf32> to vector<8x128xbf16>
    %c0_17 = arith.constant 0 : index
    %c0_18 = arith.constant 0 : index
    %22 = vector.load %arg8[%c0_17, %c0_18] : memref<8x128xbf16, #tpu.memory_space<vmem>>, vector<8x128xbf16>
    tpu.vector_store %arg8[%c0_17, %c0_18], %21 {strides = array<i32>} : memref<8x128xbf16, #tpu.memory_space<vmem>>, vector<8x128xbf16>,
    return
  }
  func.func @transform_0(%arg0: i32) -> (i32, i32) {
    %c0_i32 = arith.constant 0 : i32
    %c0_i32_0 = arith.constant 0 : i32
    return %arg0, %c0_i32 : i32, i32
  }
  func.func @transform_1(%arg0: i32) -> (i32, i32) {
    %c0_i32 = arith.constant 0 : i32
    %c0_i32_0 = arith.constant 0 : i32
    %c0_i32_1 = arith.constant 0 : i32
    return %c0_i32, %c0_i32_0 : i32, i32
  }
  func.func @transform_2(%arg0: i32) -> (i32, i32) {
    %c0_i32 = arith.constant 0 : i32
    %c0_i32_0 = arith.constant 0 : i32
    %c0_i32_1 = arith.constant 0 : i32
    return %c0_i32, %c0_i32_0 : i32, i32
  }
  func.func @transform_3(%arg0: i32) -> (i32, i32) {
    %c0_i32 = arith.constant 0 : i32
    %c0_i32_0 = arith.constant 0 : i32
    %c0_i32_1 = arith.constant 0 : i32
    return %c0_i32, %c0_i32_0 : i32, i32
  }
  func.func @transform_4(%arg0: i32) -> (i32, i32) {
    %c0_i32 = arith.constant 0 : i32
    %c0_i32_0 = arith.constant 0 : i32
    %c0_i32_1 = arith.constant 0 : i32
    return %c0_i32, %c0_i32_0 : i32, i32
  }
  func.func @transform_5(%arg0: i32) -> (i32, i32) {
    %c0_i32 = arith.constant 0 : i32
    %c0_i32_0 = arith.constant 0 : i32
    %c0_i32_1 = arith.constant 0 : i32
    return %c0_i32, %c0_i32_0 : i32, i32
  }
  func.func @transform_6(%arg0: i32) -> (i32, i32) {
    %c0_i32 = arith.constant 0 : i32
    %c0_i32_0 = arith.constant 0 : i32
    %c0_i32_1 = arith.constant 0 : i32
    return %c0_i32, %c0_i32_0 : i32, i32
  }
  func.func @transform_7(%arg0: i32) -> (i32, i32) {
    %c0_i32 = arith.constant 0 : i32
    %c0_i32_0 = arith.constant 0 : i32
    return %arg0, %c0_i32 : i32, i32
  }
}

</mosaic_0001>

<llo_original>
// kernel: residual_network_forward.1
$region0: #{residual_network_forward.1}
  #allocation0 [shape = 'u32[]', space=smem, size = 0x4, offset = 0x4, fixed_abs, tag = 'smem constant byte address 0x4 - core index']
  #allocation1 [shape = 'u32[72,128]{1,0:T(1,128)}', space=vmem, size = 0x9000, scoped, tag = 'internal scratch']
  %s0 = inlined_call_operand.vmem [shape: f32[6,784], index: 0, kind: input, shape index: {}]
  %s1 = inlined_call_operand.vmem [shape: f32[784,64], index: 1, kind: input, shape index: {}]
  %s2 = inlined_call_operand.vmem [shape: f32[1,64], index: 2, kind: input, shape index: {}]
  %s3 = inlined_call_operand.vmem [shape: f32[64,64], index: 3, kind: input, shape index: {}]
  %s4 = inlined_call_operand.vmem [shape: f32[1,64], index: 4, kind: input, shape index: {}]
  %s5 = inlined_call_operand.vmem [shape: f32[64,128], index: 5, kind: input, shape index: {}]
  %s6 = inlined_call_operand.vmem [shape: f32[1,128], index: 6, kind: input, shape index: {}]
  %s7 = inlined_call_operand.vmem [shape: bf16[6,128], index: 7, kind: output, shape index: {}]
  %s8 = sld [smem:[#allocation0]]
  $region38: #{residual_network_forward.1} parent=0
    _
  %s10 = ssub.s32 1, %s8
  %s11 = scalar_select 0, %s10, %s8
  // Predicated region
  $region2: #{residual_network_forward.1} parent=0 // pred_check
    _
  $region3: #{residual_network_forward.1} parent=0 // pred_check_branch
    %13 = sbr.rel (0) target = $region5
  $region4: #{residual_network_forward.1} parent=0 // pred_region
    _
  $region5: #{residual_network_forward.1} parent=0 // pred_fallthru
    _
  // Predicated region
  $region6: #{residual_network_forward.1} parent=0 // pred_check
    _
  $region7: #{residual_network_forward.1} parent=0 // pred_check_branch
    %15 = sbr.rel (0) target = $region9
  $region8: #{residual_network_forward.1} parent=0 // pred_region
    _
  $region9: #{residual_network_forward.1} parent=0 // pred_fallthru
    _
  // Predicated region
  $region10: #{residual_network_forward.1} parent=0 // pred_check
    _
  $region11: #{residual_network_forward.1} parent=0 // pred_check_branch
    %17 = sbr.rel (0) target = $region13
  $region12: #{residual_network_forward.1} parent=0 // pred_region
    _
  $region13: #{residual_network_forward.1} parent=0 // pred_fallthru
    _
  // Predicated region
  $region14: #{residual_network_forward.1} parent=0 // pred_check
    _
  $region15: #{residual_network_forward.1} parent=0 // pred_check_branch
    %19 = sbr.rel (0) target = $region17
  $region16: #{residual_network_forward.1} parent=0 // pred_region
    _
  $region17: #{residual_network_forward.1} parent=0 // pred_fallthru
    _
  // Predicated region
  $region18: #{residual_network_forward.1} parent=0 // pred_check
    _
  $region19: #{residual_network_forward.1} parent=0 // pred_check_branch
    %21 = sbr.rel (0) target = $region21
  $region20: #{residual_network_forward.1} parent=0 // pred_region
    _
  $region21: #{residual_network_forward.1} parent=0 // pred_fallthru
    _
  // Predicated region
  $region22: #{residual_network_forward.1} parent=0 // pred_check
    _
  $region23: #{residual_network_forward.1} parent=0 // pred_check_branch
    %23 = sbr.rel (0) target = $region25
  $region24: #{residual_network_forward.1} parent=0 // pred_region
    _
  $region25: #{residual_network_forward.1} parent=0 // pred_fallthru
    _
  // Predicated region
  $region26: #{residual_network_forward.1} parent=0 // pred_check
    _
  $region27: #{residual_network_forward.1} parent=0 // pred_check_branch
    %25 = sbr.rel (0) target = $region29
  $region28: #{residual_network_forward.1} parent=0 // pred_region
    _
  $region29: #{residual_network_forward.1} parent=0 // pred_fallthru
    _
  %v26 = vld [vmem:[%s0] sm:$0xff]
  %v27 = vld [vmem:[%s0 + $0x8] sm:$0xff]
  %v28 = vld [vmem:[%s0 + $0x10] sm:$0xff]
  %v29 = vld [vmem:[%s0 + $0x18] sm:$0xff]
  %v30 = vld [vmem:[%s0 + $0x20] sm:$0xff]
  %v31 = vld [vmem:[%s0 + $0x28] sm:$0xff]
  %v32 = vld [vmem:[%s0 + $0x30] sm:$0xff]
  %v33 = vld [vmem:[%s1] sm:$0xff]
  %v34 = vld [vmem:[%s1 + $0x8] sm:$0xff]
  %v35 = vld [vmem:[%s1 + $0x10] sm:$0xff]
  %v36 = vld [vmem:[%s1 + $0x18] sm:$0xff]
  %v37 = vld [vmem:[%s1 + $0x20] sm:$0xff]
  %v38 = vld [vmem:[%s1 + $0x28] sm:$0xff]
  %v39 = vld [vmem:[%s1 + $0x30] sm:$0xff]
  %v40 = vld [vmem:[%s1 + $0x38] sm:$0xff]
  %v41 = vld [vmem:[%s1 + $0x40] sm:$0xff]
  %v42 = vld [vmem:[%s1 + $0x48] sm:$0xff]
  %v43 = vld [vmem:[%s1 + $0x50] sm:$0xff]
  %v44 = vld [vmem:[%s1 + $0x58] sm:$0xff]
  %v45 = vld [vmem:[%s1 + $0x60] sm:$0xff]
  %v46 = vld [vmem:[%s1 + $0x68] sm:$0xff]
  %v47 = vld [vmem:[%s1 + $0x70] sm:$0xff]
  %v48 = vld [vmem:[%s1 + $0x78] sm:$0xff]
  %v49 = vld [vmem:[%s1 + $0x80] sm:$0xff]
  %v50 = vld [vmem:[%s1 + $0x88] sm:$0xff]
  %v51 = vld [vmem:[%s1 + $0x90] sm:$0xff]
  %v52 = vld [vmem:[%s1 + $0x98] sm:$0xff]
  %v53 = vld [vmem:[%s1 + $0xa0] sm:$0xff]
  %v54 = vld [vmem:[%s1 + $0xa8] sm:$0xff]
  %v55 = vld [vmem:[%s1 + $0xb0] sm:$0xff]
  %v56 = vld [vmem:[%s1 + $0xb8] sm:$0xff]
  %v57 = vld [vmem:[%s1 + $0xc0] sm:$0xff]
  %v58 = vld [vmem:[%s1 + $0xc8] sm:$0xff]
  %v59 = vld [vmem:[%s1 + $0xd0] sm:$0xff]
  %v60 = vld [vmem:[%s1 + $0xd8] sm:$0xff]
  %v61 = vld [vmem:[%s1 + $0xe0] sm:$0xff]
  %v62 = vld [vmem:[%s1 + $0xe8] sm:$0xff]
  %v63 = vld [vmem:[%s1 + $0xf0] sm:$0xff]
  %v64 = vld [vmem:[%s1 + $0xf8] sm:$0xff]
  %v65 = vld [vmem:[%s1 + $0x100] sm:$0xff]
  %v66 = vld [vmem:[%s1 + $0x108] sm:$0xff]
  %v67 = vld [vmem:[%s1 + $0x110] sm:$0xff]
  %v68 = vld [vmem:[%s1 + $0x118] sm:$0xff]
  %v69 = vld [vmem:[%s1 + $0x120] sm:$0xff]
  %v70 = vld [vmem:[%s1 + $0x128] sm:$0xff]
  %v71 = vld [vmem:[%s1 + $0x130] sm:$0xff]
  %v72 = vld [vmem:[%s1 + $0x138] sm:$0xff]
  %v73 = vld [vmem:[%s1 + $0x140] sm:$0xff]
  %v74 = vld [vmem:[%s1 + $0x148] sm:$0xff]
  %v75 = vld [vmem:[%s1 + $0x150] sm:$0xff]
  %v76 = vld [vmem:[%s1 + $0x158] sm:$0xff]
  %v77 = vld [vmem:[%s1 + $0x160] sm:$0xff]
  %v78 = vld [vmem:[%s1 + $0x168] sm:$0xff]
  %v79 = vld [vmem:[%s1 + $0x170] sm:$0xff]
  %v80 = vld [vmem:[%s1 + $0x178] sm:$0xff]
  %v81 = vld [vmem:[%s1 + $0x180] sm:$0xff]
  %v82 = vld [vmem:[%s1 + $0x188] sm:$0xff]
  %v83 = vld [vmem:[%s1 + $0x190] sm:$0xff]
  %v84 = vld [vmem:[%s1 + $0x198] sm:$0xff]
  %v85 = vld [vmem:[%s1 + $0x1a0] sm:$0xff]
  %v86 = vld [vmem:[%s1 + $0x1a8] sm:$0xff]
  %v87 = vld [vmem:[%s1 + $0x1b0] sm:$0xff]
  %v88 = vld [vmem:[%s1 + $0x1b8] sm:$0xff]
  %v89 = vld [vmem:[%s1 + $0x1c0] sm:$0xff]
  %v90 = vld [vmem:[%s1 + $0x1c8] sm:$0xff]
  %v91 = vld [vmem:[%s1 + $0x1d0] sm:$0xff]
  %v92 = vld [vmem:[%s1 + $0x1d8] sm:$0xff]
  %v93 = vld [vmem:[%s1 + $0x1e0] sm:$0xff]
  %v94 = vld [vmem:[%s1 + $0x1e8] sm:$0xff]
  %v95 = vld [vmem:[%s1 + $0x1f0] sm:$0xff]
  %v96 = vld [vmem:[%s1 + $0x1f8] sm:$0xff]
  %v97 = vld [vmem:[%s1 + $0x200] sm:$0xff]
  %v98 = vld [vmem:[%s1 + $0x208] sm:$0xff]
  %v99 = vld [vmem:[%s1 + $0x210] sm:$0xff]
  %v100 = vld [vmem:[%s1 + $0x218] sm:$0xff]
  %v101 = vld [vmem:[%s1 + $0x220] sm:$0xff]
  %v102 = vld [vmem:[%s1 + $0x228] sm:$0xff]
  %v103 = vld [vmem:[%s1 + $0x230] sm:$0xff]
  %v104 = vld [vmem:[%s1 + $0x238] sm:$0xff]
  %v105 = vld [vmem:[%s1 + $0x240] sm:$0xff]
  %v106 = vld [vmem:[%s1 + $0x248] sm:$0xff]
  %v107 = vld [vmem:[%s1 + $0x250] sm:$0xff]
  %v108 = vld [vmem:[%s1 + $0x258] sm:$0xff]
  %v109 = vld [vmem:[%s1 + $0x260] sm:$0xff]
  %v110 = vld [vmem:[%s1 + $0x268] sm:$0xff]
  %v111 = vld [vmem:[%s1 + $0x270] sm:$0xff]
  %v112 = vld [vmem:[%s1 + $0x278] sm:$0xff]
  %v113 = vld [vmem:[%s1 + $0x280] sm:$0xff]
  %v114 = vld [vmem:[%s1 + $0x288] sm:$0xff]
  %v115 = vld [vmem:[%s1 + $0x290] sm:$0xff]
  %v116 = vld [vmem:[%s1 + $0x298] sm:$0xff]
  %v117 = vld [vmem:[%s1 + $0x2a0] sm:$0xff]
  %v118 = vld [vmem:[%s1 + $0x2a8] sm:$0xff]
  %v119 = vld [vmem:[%s1 + $0x2b0] sm:$0xff]
  %v120 = vld [vmem:[%s1 + $0x2b8] sm:$0xff]
  %v121 = vld [vmem:[%s1 + $0x2c0] sm:$0xff]
  %v122 = vld [vmem:[%s1 + $0x2c8] sm:$0xff]
  %v123 = vld [vmem:[%s1 + $0x2d0] sm:$0xff]
  %v124 = vld [vmem:[%s1 + $0x2d8] sm:$0xff]
  %v125 = vld [vmem:[%s1 + $0x2e0] sm:$0xff]
  %v126 = vld [vmem:[%s1 + $0x2e8] sm:$0xff]
  %v127 = vld [vmem:[%s1 + $0x2f0] sm:$0xff]
  %v128 = vld [vmem:[%s1 + $0x2f8] sm:$0xff]
  %v129 = vld [vmem:[%s1 + $0x300] sm:$0xff]
  %v130 = vld [vmem:[%s1 + $0x308] sm:$0xff]
  %v131 = vld [vmem:[%s2] sm:$0x1]
  %v133 = vperm.slane %v131, 0
  %vm135 = vcmask 130048
  %v137 = vsel %vm135, %v32, 0
  %139 = vmatpush.msra.mxu0 %v48
  %140 = vmatpush.msra.mxu0 %v47
  %141 = vmatpush.msra.mxu0 %v46
  %142 = vmatpush.msra.mxu0 %v45
  %143 = vmatpush.msra.mxu0 %v44
  %144 = vmatpush.msra.mxu0 %v43
  %145 = vmatpush.msra.mxu0 %v42
  %146 = vmatpush.msra.mxu0 %v41
  %147 = vmatpush.msra.mxu0 %v40
  %148 = vmatpush.msra.mxu0 %v39
  %149 = vmatpush.msra.mxu0 %v38
  %150 = vmatpush.msra.mxu0 %v37
  %151 = vmatpush.msra.mxu0 %v36
  %152 = vmatpush.msra.mxu0 %v35
  %153 = vmatpush.msra.mxu0 %v34
  %154 = vmatpush.msra.mxu0 %v33
  %155 = vmatmul.f32.gmra.mxu0 %v26
  %v156 = vpop.f32.mrf.mxu0
  %v157 = vadd.f32 %v133, %v156
  %158 = vdwg.mxu0
  %159 = vmatpush.msra.mxu0 %v64
  %160 = vmatpush.msra.mxu0 %v63
  %161 = vmatpush.msra.mxu0 %v62
  %162 = vmatpush.msra.mxu0 %v61
  %163 = vmatpush.msra.mxu0 %v60
  %164 = vmatpush.msra.mxu0 %v59
  %165 = vmatpush.msra.mxu0 %v58
  %166 = vmatpush.msra.mxu0 %v57
  %167 = vmatpush.msra.mxu0 %v56
  %168 = vmatpush.msra.mxu0 %v55
  %169 = vmatpush.msra.mxu0 %v54
  %170 = vmatpush.msra.mxu0 %v53
  %171 = vmatpush.msra.mxu0 %v52
  %172 = vmatpush.msra.mxu0 %v51
  %173 = vmatpush.msra.mxu0 %v50
  %174 = vmatpush.msra.mxu0 %v49
  %175 = vmatmul.f32.gmra.mxu0 %v27
  %v176 = vpop.f32.mrf.mxu0
  %v177 = vadd.f32 %v157, %v176
  %178 = vdwg.mxu0
  %179 = vmatpush.msra.mxu0 %v80
  %180 = vmatpush.msra.mxu0 %v79
  %181 = vmatpush.msra.mxu0 %v78
  %182 = vmatpush.msra.mxu0 %v77
  %183 = vmatpush.msra.mxu0 %v76
  %184 = vmatpush.msra.mxu0 %v75
  %185 = vmatpush.msra.mxu0 %v74
  %186 = vmatpush.msra.mxu0 %v73
  %187 = vmatpush.msra.mxu0 %v72
  %188 = vmatpush.msra.mxu0 %v71
  %189 = vmatpush.msra.mxu0 %v70
  %190 = vmatpush.msra.mxu0 %v69
  %191 = vmatpush.msra.mxu0 %v68
  %192 = vmatpush.msra.mxu0 %v67
  %193 = vmatpush.msra.mxu0 %v66
  %194 = vmatpush.msra.mxu0 %v65
  %195 = vmatmul.f32.gmra.mxu0 %v28
  %v196 = vpop.f32.mrf.mxu0
  %v197 = vadd.f32 %v177, %v196
  %198 = vdwg.mxu0
  %199 = vmatpush.msra.mxu0 %v96
  %200 = vmatpush.msra.mxu0 %v95
  %201 = vmatpush.msra.mxu0 %v94
  %202 = vmatpush.msra.mxu0 %v93
  %203 = vmatpush.msra.mxu0 %v92
  %204 = vmatpush.msra.mxu0 %v91
  %205 = vmatpush.msra.mxu0 %v90
  %206 = vmatpush.msra.mxu0 %v89
  %207 = vmatpush.msra.mxu0 %v88
  %208 = vmatpush.msra.mxu0 %v87
  %209 = vmatpush.msra.mxu0 %v86
  %210 = vmatpush.msra.mxu0 %v85
  %211 = vmatpush.msra.mxu0 %v84
  %212 = vmatpush.msra.mxu0 %v83
  %213 = vmatpush.msra.mxu0 %v82
  %214 = vmatpush.msra.mxu0 %v81
  %215 = vmatmul.f32.gmra.mxu0 %v29
  %v216 = vpop.f32.mrf.mxu0
  %v217 = vadd.f32 %v197, %v216
  %218 = vdwg.mxu0
  %219 = vmatpush.msra.mxu0 %v112
  %220 = vmatpush.msra.mxu0 %v111
  %221 = vmatpush.msra.mxu0 %v110
  %222 = vmatpush.msra.mxu0 %v109
  %223 = vmatpush.msra.mxu0 %v108
  %224 = vmatpush.msra.mxu0 %v107
  %225 = vmatpush.msra.mxu0 %v106
  %226 = vmatpush.msra.mxu0 %v105
  %227 = vmatpush.msra.mxu0 %v104
  %228 = vmatpush.msra.mxu0 %v103
  %229 = vmatpush.msra.mxu0 %v102
  %230 = vmatpush.msra.mxu0 %v101
  %231 = vmatpush.msra.mxu0 %v100
  %232 = vmatpush.msra.mxu0 %v99
  %233 = vmatpush.msra.mxu0 %v98
  %234 = vmatpush.msra.mxu0 %v97
  %235 = vmatmul.f32.gmra.mxu0 %v30
  %v236 = vpop.f32.mrf.mxu0
  %v237 = vadd.f32 %v217, %v236
  %238 = vdwg.mxu0
  %239 = vmatpush.msra.mxu0 %v128
  %240 = vmatpush.msra.mxu0 %v127
  %241 = vmatpush.msra.mxu0 %v126
  %242 = vmatpush.msra.mxu0 %v125
  %243 = vmatpush.msra.mxu0 %v124
  %244 = vmatpush.msra.mxu0 %v123
  %245 = vmatpush.msra.mxu0 %v122
  %246 = vmatpush.msra.mxu0 %v121
  %247 = vmatpush.msra.mxu0 %v120
  %248 = vmatpush.msra.mxu0 %v119
  %249 = vmatpush.msra.mxu0 %v118
  %250 = vmatpush.msra.mxu0 %v117
  %251 = vmatpush.msra.mxu0 %v116
  %252 = vmatpush.msra.mxu0 %v115
  %253 = vmatpush.msra.mxu0 %v114
  %254 = vmatpush.msra.mxu0 %v113
  %255 = vmatmul.f32.gmra.mxu0 %v31
  %v256 = vpop.f32.mrf.mxu0
  %v257 = vadd.f32 %v237, %v256
  %258 = vdwg.mxu0
  %259 = vmatpush.msra.mxu0 0.0
  %260 = vmatpush.msra.mxu0 0.0
  %261 = vmatpush.msra.mxu0 0.0
  %262 = vmatpush.msra.mxu0 0.0
  %263 = vmatpush.msra.mxu0 0.0
  %264 = vmatpush.msra.mxu0 0.0
  %265 = vmatpush.msra.mxu0 0.0
  %266 = vmatpush.msra.mxu0 0.0
  %267 = vmatpush.msra.mxu0 0.0
  %268 = vmatpush.msra.mxu0 0.0
  %269 = vmatpush.msra.mxu0 0.0
  %270 = vmatpush.msra.mxu0 0.0
  %271 = vmatpush.msra.mxu0 0.0
  %272 = vmatpush.msra.mxu0 0.0
  %273 = vmatpush.msra.mxu0 %v130
  %274 = vmatpush.msra.mxu0 %v129
  %275 = vmatmul.f32.gmra.mxu0 %v137
  %v276 = vpop.f32.mrf.mxu0
  %v277 = vadd.f32 %v257, %v276
  %278 = vdwg.mxu0
  %v279 = vmax.f32 %v277, 0.0
  %v280 = vld [vmem:[%s3] sm:$0xff]
  %v281 = vld [vmem:[%s3 + $0x8] sm:$0xff]
  %v282 = vld [vmem:[%s3 + $0x10] sm:$0xff]
  %v283 = vld [vmem:[%s3 + $0x18] sm:$0xff]
  %v284 = vld [vmem:[%s3 + $0x20] sm:$0xff]
  %v285 = vld [vmem:[%s3 + $0x28] sm:$0xff]
  %v286 = vld [vmem:[%s3 + $0x30] sm:$0xff]
  %v287 = vld [vmem:[%s3 + $0x38] sm:$0xff]
  %v288 = vld [vmem:[%s4] sm:$0x1]
  %v290 = vperm.slane %v288, 0
  %vm292 = vcmask 523264
  %v294 = vsel %vm292, %v279, 0
  %296 = vmatpush.msra.mxu0 0.0
  %297 = vmatpush.msra.mxu0 0.0
  %298 = vmatpush.msra.mxu0 0.0
  %299 = vmatpush.msra.mxu0 0.0
  %300 = vmatpush.msra.mxu0 0.0
  %301 = vmatpush.msra.mxu0 0.0
  %302 = vmatpush.msra.mxu0 0.0
  %303 = vmatpush.msra.mxu0 0.0
  %304 = vmatpush.msra.mxu0 %v287
  %305 = vmatpush.msra.mxu0 %v286
  %306 = vmatpush.msra.mxu0 %v285
  %307 = vmatpush.msra.mxu0 %v284
  %308 = vmatpush.msra.mxu0 %v283
  %309 = vmatpush.msra.mxu0 %v282
  %310 = vmatpush.msra.mxu0 %v281
  %311 = vmatpush.msra.mxu0 %v280
  %312 = vmatmul.f32.gmra.mxu0 %v294
  %v313 = vpop.f32.mrf.mxu0
  %v314 = vadd.f32 %v290, %v313
  %315 = vdwg.mxu0
  %v316 = vmax.f32 %v314, 0.0
  %v317 = vadd.f32 %v279, %v316
  %v318 = vld [vmem:[%s5] sm:$0xff]
  %v319 = vld [vmem:[%s5 + $0x8] sm:$0xff]
  %v320 = vld [vmem:[%s5 + $0x10] sm:$0xff]
  %v321 = vld [vmem:[%s5 + $0x18] sm:$0xff]
  %v322 = vld [vmem:[%s5 + $0x20] sm:$0xff]
  %v323 = vld [vmem:[%s5 + $0x28] sm:$0xff]
  %v324 = vld [vmem:[%s5 + $0x30] sm:$0xff]
  %v325 = vld [vmem:[%s5 + $0x38] sm:$0xff]
  %v326 = vld [vmem:[%s6] sm:$0x1]
  %v328 = vperm.slane %v326, 0
  %v331 = vsel %vm292, %v317, 0
  %333 = vmatpush.msra.mxu0 0.0
  %334 = vmatpush.msra.mxu0 0.0
  %335 = vmatpush.msra.mxu0 0.0
  %336 = vmatpush.msra.mxu0 0.0
  %337 = vmatpush.msra.mxu0 0.0
  %338 = vmatpush.msra.mxu0 0.0
  %339 = vmatpush.msra.mxu0 0.0
  %340 = vmatpush.msra.mxu0 0.0
  %341 = vmatpush.msra.mxu0 %v325
  %342 = vmatpush.msra.mxu0 %v324
  %343 = vmatpush.msra.mxu0 %v323
  %344 = vmatpush.msra.mxu0 %v322
  %345 = vmatpush.msra.mxu0 %v321
  %346 = vmatpush.msra.mxu0 %v320
  %347 = vmatpush.msra.mxu0 %v319
  %348 = vmatpush.msra.mxu0 %v318
  %349 = vmatmul.f32.gmra.mxu0 %v331
  %v350 = vpop.f32.mrf.mxu0
  %v351 = vadd.f32 %v328, %v350
  %352 = vdwg.mxu0
  %v353 = vpack.c.bf16 %v351, %v351
  %354 = vst [vmem:[%s7] sm:$0xf] %v353
  // Predicated region
  $region30: #{residual_network_forward.1} parent=0 // pred_check
    _
  $region31: #{residual_network_forward.1} parent=0 // pred_check_branch
    %356 = sbr.rel (0) target = $region33
  $region32: #{residual_network_forward.1} parent=0 // pred_region
    _
  $region33: #{residual_network_forward.1} parent=0 // pred_fallthru
    _
  // Predicated region
  $region34: #{residual_network_forward.1} parent=0 // pred_check
    _
  $region35: #{residual_network_forward.1} parent=0 // pred_check_branch
    %358 = sbr.rel (0) target = $region37
  $region36: #{residual_network_forward.1} parent=0 // pred_region
    _
  $region37: #{residual_network_forward.1} parent=0 // pred_fallthru
    _

</llo_original>
